<compile_context>
chip_gen: v7x
topology: tpu7x:2x2x1
jax: 0.10.0
libtpu: 0.0.40
codegen_flags: <defaults>
</compile_context>

<pallas_src>
import functools

import numpy as np
import jax
import jax.numpy as jnp
from jax import lax
from jax.experimental import pallas as pl
from jax.experimental.pallas import tpu as pltpu


def _cdiv(a, b):
    return -(-a // b)


def _tree_sum_8rows(sq, chunk):
    """Pairwise-tree reduce a (chunk, 128) f32 value to (8, 128)."""
    parts = [sq[k * 8:(k + 1) * 8, :] for k in range(chunk // 8)]
    while len(parts) > 1:
        nxt = [parts[i] + parts[i + 1] for i in range(0, len(parts) - 1, 2)]
        if len(parts) % 2:
            nxt.append(parts[-1])
        parts = nxt
    return parts[0]


def _psnr_partial_kernel(pred_ref, tgt_ref, out_ref, *, weights, chunk, n_chunks,
                         br, tiles_per_split, valid_rows, mask_rows, unroll):
    """Accumulate per-(sample, split) squared-error partial sums.

    pred_ref / tgt_ref : (1, C, br, 128) blocks in native dtype.
    out_ref            : (1, 1, 8, 128) float32, resident across the tile axis.
    """
    s = pl.program_id(1)
    t = pl.program_id(2)

    @pl.when(t == 0)
    def _():
        out_ref[...] = jnp.zeros_like(out_ref)

    if mask_rows:
        # Global row offset of this tile; uses the *unclamped* tile index so
        # over-coverage tiles (clamped by the index_map) are fully masked.
        tile_row0 = (s * tiles_per_split + t) * br
        row_iota = lax.broadcasted_iota(jnp.int32, (chunk, 128), 0)

    def chunk_body(j, acc):
        base = pl.multiple_of(j * chunk, chunk)
        diff = None
        for c, w in enumerate(weights):       # static channel loop (1 or 3)
            p = pred_ref[0, c, pl.ds(base, chunk), :].astype(jnp.float32)
            q = tgt_ref[0, c, pl.ds(base, chunk), :].astype(jnp.float32)
            dc = p - q
            if w != 1.0:
                dc = dc * w
            diff = dc if diff is None else diff + dc
        sq = diff * diff
        if mask_rows:
            limit = valid_rows - tile_row0 - base
            sq = jnp.where(row_iota < limit, sq, 0.0)
        return acc + _tree_sum_8rows(sq, chunk)

    acc = lax.fori_loop(0, n_chunks, chunk_body,
                        jnp.zeros((8, 128), jnp.float32), unroll=unroll)
    out_ref[0, 0] += acc


# Per-buffer byte budget for one pipelined input block: 2 inputs x 2 pipeline
# buffers x 4 MiB = 16 MiB of input buffers, well under the explicit VMEM limit
# below on every generation (v7x has only 64 MiB physical VMEM).
_BLOCK_BYTES = 4 * 1024 * 1024
_VMEM_LIMIT_BYTES = 40 * 1024 * 1024


def psnr_loss(pred, target, loss_weight=1.0, toY=False):
    """Pallas implementation of PSNRLoss.forward. pred/target: NCHW."""
    assert pred.ndim == 4 and target.ndim == 4
    assert pred.shape == target.shape
    scale = 10.0 / np.log(10.0)
    n = pred.shape[0]

    if toY:
        assert pred.shape[1] == 3
        # Fused RGB->Y:  Yp - Yt = sum_c (coef_c / 255) * (p_c - t_c)
        # (the +16.0 offsets cancel in the difference).
        weights = tuple(c / 255.0 for c in (65.481, 128.553, 24.966))
        num_ch = 3
        d = pred.shape[2] * pred.shape[3]
    else:
        weights = (1.0,)
        num_ch = 1
        d = int(np.prod(pred.shape[1:]))

    x_p = pred.reshape(n, num_ch, -1)
    x_t = target.reshape(n, num_ch, -1)

    # Lane-dense per-sample layout (n, C, rows, 128).  Zero-copy reshape when
    # the flat length is a multiple of 128 (and >= 8 rows); otherwise pad only
    # the ragged tail (this is the only remaining wrapper-side HBM copy).
    r_rows = _cdiv(d, 128)
    need_pad = (d % 128 != 0) or (r_rows < 8)
    rows_arr = max(r_rows, 8) if need_pad else r_rows
    if need_pad:
        # TODO(synk): remove this copy for ragged shapes via manual DMA plus
        # in-kernel element masking of the final partial lane row.
        pad = rows_arr * 128 - d
        x_p = jnp.pad(x_p, ((0, 0), (0, 0), (0, pad)))
        x_t = jnp.pad(x_t, ((0, 0), (0, 0), (0, pad)))
    x_p = x_p.reshape(n, num_ch, rows_arr, 128)
    x_t = x_t.reshape(n, num_ch, rows_arr, 128)

    # Split the reduction across a second "parallel" axis for single-sample
    # inputs so both v7x TensorCores get work.
    n_splits = 2 if (n == 1 and rows_arr >= 16) else 1
    rows_per_split = _cdiv(rows_arr, n_splits)

    itemsize = jnp.dtype(x_p.dtype).itemsize
    br_cap = max(8, (_BLOCK_BYTES // (num_ch * 128 * itemsize)) // 8 * 8)
    br = max(8, min(br_cap, (rows_per_split // 8) * 8))

    total_tiles = _cdiv(rows_arr, br)
    tiles_per_split = _cdiv(total_tiles, n_splits)
    # Row tiles may over-cover the array (ragged last tile / uneven split);
    # mask those rows inside the kernel instead of padding HBM.
    mask_rows = (n_splits * tiles_per_split * br) != rows_arr

    chunk = next(c for c in (128, 64, 32, 16, 8) if br % c == 0)
    n_chunks = br // chunk
    unroll = min(n_chunks, 4 if chunk <= 64 else 2)

    kernel = functools.partial(
        _psnr_partial_kernel, weights=weights, chunk=chunk, n_chunks=n_chunks,
        br=br, tiles_per_split=tiles_per_split, valid_rows=rows_arr,
        mask_rows=mask_rows, unroll=unroll)

    def in_map(i, s, t):
        # Clamp over-coverage tiles onto the last valid tile; their data is
        # zeroed by the in-kernel row mask, so only the DMA is redundant.
        return (i, 0, jnp.minimum(s * tiles_per_split + t, total_tiles - 1), 0)

    partial = pl.pallas_call(
        kernel,
        out_shape=jax.ShapeDtypeStruct((n, n_splits, 8, 128), jnp.float32),
        grid=(n, n_splits, tiles_per_split),
        in_specs=[
            pl.BlockSpec((1, num_ch, br, 128), in_map),
            pl.BlockSpec((1, num_ch, br, 128), in_map),
        ],
        out_specs=pl.BlockSpec((1, 1, 8, 128), lambda i, s, t: (i, s, 0, 0)),
        compiler_params=pltpu.CompilerParams(
            dimension_semantics=("parallel", "parallel", "arbitrary"),
            vmem_limit_bytes=_VMEM_LIMIT_BYTES,
        ),
    )(x_p, x_t)

    # Tiny epilogue over n * n_splits partial blocks: reduce, log, mean, scale.
    per_sample_sum = jnp.sum(partial.reshape(n, -1), axis=-1)
    mse = per_sample_sum / float(d)
    return (float(loss_weight) * float(scale)) * jnp.mean(jnp.log(mse + 1e-8))


def psnr_loss_ref(pred, target, loss_weight=1.0, toY=False):
    """Plain-JAX reference mirroring the PyTorch module."""
    scale = 10.0 / np.log(10.0)
    if toY:
        coef = jnp.asarray([65.481, 128.553, 24.966], dtype=jnp.float32).reshape(
            1, 3, 1, 1)
        pred = (pred * coef).sum(axis=1, keepdims=True) + 16.0
        target = (target * coef).sum(axis=1, keepdims=True) + 16.0
        pred, target = pred / 255.0, target / 255.0
    mse = jnp.mean((pred - target) ** 2, axis=(1, 2, 3))
    return loss_weight * scale * jnp.mean(jnp.log(mse + 1e-8))


if __name__ == "__main__":
    key = jax.random.PRNGKey(0)
    ks = jax.random.split(key, 10)

    # Case 1: C*H*W multiple of 128 -> zero-copy layout, no mask.
    p1 = jax.random.uniform(ks[0], (2, 4, 16, 16), dtype=jnp.float32)
    t1 = jax.random.uniform(ks[1], (2, 4, 16, 16), dtype=jnp.float32)
    o1 = jax.block_until_ready(psnr_loss(p1, t1))
    np.testing.assert_allclose(np.asarray(o1), np.asarray(psnr_loss_ref(p1, t1)),
                               rtol=1e-5, atol=1e-5)

    # Case 2: toY=True, RGB->Y fused into the kernel.
    p2 = jax.random.uniform(ks[2], (2, 3, 16, 16), dtype=jnp.float32)
    t2 = jax.random.uniform(ks[3], (2, 3, 16, 16), dtype=jnp.float32)
    o2 = jax.block_until_ready(psnr_loss(p2, t2, toY=True))
    np.testing.assert_allclose(np.asarray(o2),
                               np.asarray(psnr_loss_ref(p2, t2, toY=True)),
                               rtol=1e-5, atol=1e-4)

    # Case 3: C*H*W not a multiple of 128 -> minimal-tail-pad fallback.
    p3 = jax.random.uniform(ks[4], (2, 3, 10, 10), dtype=jnp.float32)
    t3 = jax.random.uniform(ks[5], (2, 3, 10, 10), dtype=jnp.float32)
    o3 = jax.block_until_ready(psnr_loss(p3, t3, loss_weight=0.5))
    np.testing.assert_allclose(np.asarray(o3),
                               np.asarray(psnr_loss_ref(p3, t3, loss_weight=0.5)),
                               rtol=1e-5, atol=1e-5)

    # Case 4: batch==1 -> reduction split across the extra "parallel" axis.
    p4 = jax.random.uniform(ks[6], (1, 4, 16, 64), dtype=jnp.float32)
    t4 = jax.random.uniform(ks[7], (1, 4, 16, 64), dtype=jnp.float32)
    o4 = jax.block_until_ready(psnr_loss(p4, t4))
    np.testing.assert_allclose(np.asarray(o4), np.asarray(psnr_loss_ref(p4, t4)),
                               rtol=1e-5, atol=1e-5)

    # Case 5: batch==1, ragged rows + odd tile count -> clamped over-coverage
    # tile fully masked inside the kernel.
    p5 = jax.random.uniform(ks[8], (1, 3, 40, 40), dtype=jnp.float32)
    t5 = jax.random.uniform(ks[9], (1, 3, 40, 40), dtype=jnp.float32)
    o5 = jax.block_until_ready(psnr_loss(p5, t5))
    np.testing.assert_allclose(np.asarray(o5), np.asarray(psnr_loss_ref(p5, t5)),
                               rtol=1e-5, atol=1e-5)

    print("KERNEL_OK")
</pallas_src>

<mosaic_0001>
module attributes {stable_mosaic.version = 11 : i64} {
  func.func @_psnr_partial_kernel(%arg0: i32, %arg1: i32, %arg2: i32, %arg3: memref<1x1x8x128xf32, #tpu.memory_space<vmem>>, %arg4: memref<1x1x8x128xf32, #tpu.memory_space<vmem>>, %arg5: memref<1x1x8x128xf32, #tpu.memory_space<vmem>>) attributes {dimension_semantics = [#tpu.dimension_semantics<parallel>, #tpu.dimension_semantics<parallel>, #tpu.dimension_semantics<arbitrary>], iteration_bounds = array<i64: 2, 1, 1>, scalar_prefetch = 0 : i64, scratch_operands = 0 : i64, tpu.core_type = #tpu.core_type<tc>, window_params = [{transform_indices = @transform_0, window_bounds = array<i64: 1, 1, 8, 128>}, {transform_indices = @transform_1, window_bounds = array<i64: 1, 1, 8, 128>}, {transform_indices = @transform_2, window_bounds = array<i64: 1, 1, 8, 128>}]} {
    %c0_i32 = arith.constant 0 : i32
    %0 = arith.cmpi eq, %arg2, %c0_i32 : i32
    %1 = arith.extui %0 : i1 to i32
    %c0_i32_0 = arith.constant 0 : i32
    %2 = arith.cmpi ne, %1, %c0_i32_0 : i32
    scf.if %2 {
      %cst_15 = arith.constant 0.000000e+00 : f32
      %21 = vector.broadcast %cst_15 : f32 to vector<1x1x8x128xf32>
      %c0_16 = arith.constant 0 : index
      %c0_17 = arith.constant 0 : index
      %c0_18 = arith.constant 0 : index
      %c0_19 = arith.constant 0 : index
      %22 = vector.load %arg5[%c0_16, %c0_17, %c0_18, %c0_19] : memref<1x1x8x128xf32, #tpu.memory_space<vmem>>, vector<1x1x8x128xf32>
      tpu.vector_store %arg5[%c0_16, %c0_17, %c0_18, %c0_19], %21 {strides = array<i32>} : memref<1x1x8x128xf32, #tpu.memory_space<vmem>>, vector<1x1x8x128xf32>,
    } else {
    }
    %cst = arith.constant 0.000000e+00 : f32
    %3 = vector.broadcast %cst : f32 to vector<8x128xf32>
    %c0_i32_1 = arith.constant 0 : i32
    %c8_i32 = arith.constant 8 : i32
    %4 = arith.muli %c0_i32_1, %c8_i32 : i32
    %5 = tpu.assume_multiple %4, 8 : i32
    %c0 = arith.constant 0 : index
    %c0_2 = arith.constant 0 : index
    %6 = arith.index_cast %5 : i32 to index
    %c0_3 = arith.constant 0 : index
    %7 = vector.load %arg3[%c0, %c0_2, %6, %c0_3] : memref<1x1x8x128xf32, #tpu.memory_space<vmem>>, vector<1x1x8x128xf32>
    %8 = vector.shape_cast %7 : vector<1x1x8x128xf32> to vector<8x128xf32>
    %c0_4 = arith.constant 0 : index
    %c0_5 = arith.constant 0 : index
    %9 = arith.index_cast %5 : i32 to index
    %c0_6 = arith.constant 0 : index
    %10 = vector.load %arg4[%c0_4, %c0_5, %9, %c0_6] : memref<1x1x8x128xf32, #tpu.memory_space<vmem>>, vector<1x1x8x128xf32>
    %11 = vector.shape_cast %10 : vector<1x1x8x128xf32> to vector<8x128xf32>
    %12 = arith.subf %8, %11 : vector<8x128xf32>
    %13 = arith.mulf %12, %12 : vector<8x128xf32>
    %14 = arith.addf %3, %13 : vector<8x128xf32>
    %c1_i32 = arith.constant 1 : i32
    %c0_7 = arith.constant 0 : index
    %c0_8 = arith.constant 0 : index
    %c0_9 = arith.constant 0 : index
    %c0_10 = arith.constant 0 : index
    %15 = vector.load %arg5[%c0_7, %c0_8, %c0_9, %c0_10] : memref<1x1x8x128xf32, #tpu.memory_space<vmem>>, vector<1x1x8x128xf32>
    %16 = vector.shape_cast %15 : vector<1x1x8x128xf32> to vector<8x128xf32>
    %17 = arith.addf %16, %14 : vector<8x128xf32>
    %c0_11 = arith.constant 0 : index
    %c0_12 = arith.constant 0 : index
    %c0_13 = arith.constant 0 : index
    %c0_14 = arith.constant 0 : index
    %18 = vector.load %arg5[%c0_11, %c0_12, %c0_13, %c0_14] : memref<1x1x8x128xf32, #tpu.memory_space<vmem>>, vector<1x1x8x128xf32>
    %19 = vector.shape_cast %18 : vector<1x1x8x128xf32> to vector<8x128xf32>
    %20 = vector.shape_cast %17 : vector<8x128xf32> to vector<1x1x8x128xf32>
    tpu.vector_store %arg5[%c0_11, %c0_12, %c0_13, %c0_14], %20 {strides = array<i32>} : memref<1x1x8x128xf32, #tpu.memory_space<vmem>>, vector<1x1x8x128xf32>,
    return
  }
  func.func @transform_0(%arg0: i32, %arg1: i32, %arg2: i32) -> (i32, i32, i32, i32) {
    %c1_i32 = arith.constant 1 : i32
    %0 = arith.muli %arg1, %c1_i32 : i32
    %1 = arith.addi %0, %arg2 : i32
    %c0_i32 = arith.constant 0 : i32
    %2 = arith.minsi %1, %c0_i32 : i32
    %c0_i32_0 = arith.constant 0 : i32
    %c0_i32_1 = arith.constant 0 : i32
    %c0_i32_2 = arith.constant 0 : i32
    return %arg0, %c0_i32_0, %2, %c0_i32_1 : i32, i32, i32, i32
  }
  func.func @transform_1(%arg0: i32, %arg1: i32, %arg2: i32) -> (i32, i32, i32, i32) {
    %c1_i32 = arith.constant 1 : i32
    %0 = arith.muli %arg1, %c1_i32 : i32
    %1 = arith.addi %0, %arg2 : i32
    %c0_i32 = arith.constant 0 : i32
    %2 = arith.minsi %1, %c0_i32 : i32
    %c0_i32_0 = arith.constant 0 : i32
    %c0_i32_1 = arith.constant 0 : i32
    %c0_i32_2 = arith.constant 0 : i32
    return %arg0, %c0_i32_0, %2, %c0_i32_1 : i32, i32, i32, i32
  }
  func.func @transform_2(%arg0: i32, %arg1: i32, %arg2: i32) -> (i32, i32, i32, i32) {
    %c0_i32 = arith.constant 0 : i32
    %c0_i32_0 = arith.constant 0 : i32
    %c0_i32_1 = arith.constant 0 : i32
    return %arg0, %arg1, %c0_i32, %c0_i32_0 : i32, i32, i32, i32
  }
}

</mosaic_0001>

<llo_original>
// kernel: tpu_custom_call.1
$region0: #{tpu_custom_call.1}
  #allocation0 [shape = 'u32[]', space=smem, size = 0x4, offset = 0x4, fixed_abs, tag = 'smem constant byte address 0x4 - core index']
  #allocation1 [shape = 'u32[144,128]{1,0:T(1,128)}', space=vmem, size = 0x12000, scoped, tag = 'internal scratch']
  %s0 = inlined_call_operand.hbm [shape: f32[2,1,8,128], index: 0, kind: input, shape index: {}]
  %s1 = inlined_call_operand.hbm [shape: f32[2,1,8,128], index: 1, kind: input, shape index: {}]
  %s2 = inlined_call_operand.hbm [shape: f32[2,1,8,128], index: 2, kind: output, shape index: {}]
  %s3 = sld [smem:[#allocation0]]
  $region53: #{tpu_custom_call.1} parent=0
    _
  %s5 = ssub.s32 1, %s3
  %s6 = scalar_select 0, %s5, %s3
  $region1: #{tpu_custom_call.1} parent=0
    #allocation2 [shape = 'u8[8192]{0}', space=vmem, size = 0x2000, scoped, tag = 'input window, operand 0']
    #allocation3 [shape = 's32[2]{0}', space=sflag, size = 0x8, scoped, tag = 'scoped memory for tpu_custom_call.1']
    #allocation4 [shape = 's32[2]{0}', space=sflag, size = 0x8, scoped, tag = 'scoped memory for tpu_custom_call.1']
    #allocation5 [shape = 'u8[8192]{0}', space=vmem, size = 0x2000, scoped, tag = 'input window, operand 1']
    #allocation6 [shape = 's32[2]{0}', space=sflag, size = 0x8, scoped, tag = 'scoped memory for tpu_custom_call.1']
    #allocation7 [shape = 'u8[8192]{0}', space=vmem, size = 0x2000, scoped, tag = 'output window, operand 0']
    %7 = vsyncpa [#allocation3], 0
    %s8 = scalar_lea.sflag [#allocation3], 1
    %9 = vsyncpa %s8, 0
    %10 = vsyncpa [#allocation6], 0
    %s11 = scalar_lea.sflag [#allocation6], 1
    %12 = vsyncpa %s11, 0
    %13 = vsyncpa [#allocation4], 0
    %s14 = scalar_lea.sflag [#allocation4], 1
    %15 = vsyncpa %s14, 0
    loop: start=0, step=1, limit=4
    $region2: #{tpu_custom_call.1} parent=1 // loop_pre_header
      _
    $region3: #{tpu_custom_call.1} parent=1 // loop_header
      %s17 = sphi 0, %s21
      %p18 = scmp.ge.s32.totalorder %s17, 4
      %s24 = sphi 0, %s43
      %s25 = sphi 0, %s39
      %s26 = sphi 0, %s35
      %s27 = sphi 0, %s24
      %s28 = sphi 0, %s25
      %s29 = sphi 0, %s26
      %s30 = sphi 0, %s27
      %s31 = sphi 0, %s28
      %s32 = sphi 0, %s29
      %s54 = sphi 0, %s56
      %s57 = sphi 0, %s54
      %s58 = sphi 0, %s57
      %s74 = sphi 0, %s58
      %s88 = sphi 0, %s90
      %s91 = sphi 0, %s88
      %s92 = sphi 0, %s91
      %s108 = sphi 0, %s92
      %s116 = sphi 0, %s118
      %s119 = sphi 0, %s116
      %s120 = sphi 0, %s119
      %s136 = sphi 0, %s120
    $region4: #{tpu_custom_call.1} parent=1 // loop_header_branch
      %20 = sbr.rel (%p18) target = $region8
    $region5: #{tpu_custom_call.1} parent=1 // loop_body
      %s22 = ssub.s32 %s17, 1
      %s23 = ssub.s32 %s17, 2
      %s33 = sadd.s32 1, %s26
      %p34 = scmp.ge.s32.totalorder %s33, 1
      %s35 = scalar_select %p34, 0, %s33
      %s36 = sadd.s32 1, %s25
      %s37 = scalar_select %p34, %s36, %s25
      %p38 = scmp.ge.s32.totalorder %s37, 1
      %s39 = scalar_select %p38, 0, %s37
      %s40 = sadd.s32 1, %s24
      %s41 = scalar_select %p38, %s40, %s24
      %p42 = scmp.ge.s32.totalorder %s41, 2
      %s43 = scalar_select %p42, 0, %s41
      %s44 = sadd.s32 %s25, %s26
      %p45 = scmp.lt.s32.totalorder %s44, 0
      %s46 = scalar_select %p45, %s44, 0
      %s47 = sadd.s32 %s39, %s35
      %p48 = scmp.lt.s32.totalorder %s47, 0
      %s49 = scalar_select %p48, %s47, 0
      %s50 = ssub.s32 %s24, %s43
      %s51 = ssub.s32 %s46, %s49
      %s52 = sor.u32 %s50, %s51
      %p53 = scmp.eq.s32.totalorder %s52, 0
      %s55 = sadd.s32 %s54, 1
      %s56 = scalar_select %p53, %s54, %s55
      %p59 = pneg %p53
      %p60 = scmp.eq.s32.totalorder %s17, 1
      %p61 = por %p59, %p60
      %p62 = scmp.ne.s32.totalorder %s54, %s57
      %p63 = scmp.eq.s32.totalorder %s17, 0
      %p64 = por %p62, %p63
      %p65 = scmp.ne.s32.totalorder %s54, %s57
      %p66 = scmp.eq.s32.totalorder %s22, 1
      %p67 = por %p65, %p66
      %p68 = scmp.ne.s32.totalorder %s57, %s58
      %p69 = scmp.eq.s32.totalorder %s22, 0
      %p70 = por %p68, %p69
      %p71 = scmp.ne.s32.totalorder %s57, %s58
      %p72 = scmp.eq.s32.totalorder %s23, 1
      %p73 = por %p71, %p72
      %p75 = scmp.ne.s32.totalorder %s58, %s74
      %p76 = scmp.eq.s32.totalorder %s23, 0
      %p77 = por %p75, %p76
      %s78 = sadd.s32 %s25, %s26
      %p79 = scmp.lt.s32.totalorder %s78, 0
      %s80 = scalar_select %p79, %s78, 0
      %s81 = sadd.s32 %s39, %s35
      %p82 = scmp.lt.s32.totalorder %s81, 0
      %s83 = scalar_select %p82, %s81, 0
      %s84 = ssub.s32 %s24, %s43
      %s85 = ssub.s32 %s80, %s83
      %s86 = sor.u32 %s84, %s85
      %p87 = scmp.eq.s32.totalorder %s86, 0
      %s89 = sadd.s32 %s88, 1
      %s90 = scalar_select %p87, %s88, %s89
      %p93 = pneg %p87
      %p94 = scmp.eq.s32.totalorder %s17, 1
      %p95 = por %p93, %p94
      %p96 = scmp.ne.s32.totalorder %s88, %s91
      %p97 = scmp.eq.s32.totalorder %s17, 0
      %p98 = por %p96, %p97
      %p99 = scmp.ne.s32.totalorder %s88, %s91
      %p100 = scmp.eq.s32.totalorder %s22, 1
      %p101 = por %p99, %p100
      %p102 = scmp.ne.s32.totalorder %s91, %s92
      %p103 = scmp.eq.s32.totalorder %s22, 0
      %p104 = por %p102, %p103
      %p105 = scmp.ne.s32.totalorder %s91, %s92
      %p106 = scmp.eq.s32.totalorder %s23, 1
      %p107 = por %p105, %p106
      %p109 = scmp.ne.s32.totalorder %s92, %s108
      %p110 = scmp.eq.s32.totalorder %s23, 0
      %p111 = por %p109, %p110
      %s112 = ssub.s32 %s24, %s43
      %s113 = ssub.s32 %s25, %s39
      %s114 = sor.u32 %s112, %s113
      %p115 = scmp.eq.s32.totalorder %s114, 0
      %s117 = sadd.s32 %s116, 1
      %s118 = scalar_select %p115, %s116, %s117
      %p121 = pneg %p115
      %p122 = scmp.eq.s32.totalorder %s17, 1
      %p123 = por %p121, %p122
      %p124 = scmp.ne.s32.totalorder %s116, %s119
      %p125 = scmp.eq.s32.totalorder %s17, 0
      %p126 = por %p124, %p125
      %p127 = scmp.ne.s32.totalorder %s116, %s119
      %p128 = scmp.eq.s32.totalorder %s22, 1
      %p129 = por %p127, %p128
      %p130 = scmp.ne.s32.totalorder %s119, %s120
      %p131 = scmp.eq.s32.totalorder %s22, 0
      %p132 = por %p130, %p131
      %p133 = scmp.ne.s32.totalorder %s119, %s120
      %p134 = scmp.eq.s32.totalorder %s23, 1
      %p135 = por %p133, %p134
      %p137 = scmp.ne.s32.totalorder %s120, %s136
      %p138 = scmp.eq.s32.totalorder %s23, 0
      %p139 = por %p137, %p138
      %p140 = scmp.le.s32.totalorder 1, %s17
      %p141 = scmp.lt.s32.totalorder %s17, 3
      %p142 = pnand %p140, %p141
      %p143 = pneg %p142
      // Predicated region
      $region9: #{tpu_custom_call.1} parent=5 // pred_check
        _
      $region10: #{tpu_custom_call.1} parent=5 // pred_check_branch
        %145 = sbr.rel (%p142) target = $region12
      $region11: #{tpu_custom_call.1} parent=5 // pred_region
        %s146 = ssub.s32 %s17, 1
      $region12: #{tpu_custom_call.1} parent=5 // pred_fallthru
        _
      %p147 = scmp.lt.s32.totalorder %s17, 2
      // Predicated region
      $region13: #{tpu_custom_call.1} parent=5 // pred_check
        %p148 = pneg %p147
      $region14: #{tpu_custom_call.1} parent=5 // pred_check_branch
        %150 = sbr.rel (%p148) target = $region16
      $region15: #{tpu_custom_call.1} parent=5 // pred_region
        // Predicated region
        $region17: #{tpu_custom_call.1} parent=15 // pred_check
          %p151 = pneg %p64
        $region18: #{tpu_custom_call.1} parent=15 // pred_check_branch
          %153 = sbr.rel (%p151) target = $region20
        $region19: #{tpu_custom_call.1} parent=15 // pred_region
          %s154 = sand.u32 %s54, 1
          %s155 = scalar_lea.sflag [#allocation3], %s154
          %s156 = sand.u32 %s54, 1
          %s157 = smul.addr %s156, 8
          %s158 = scalar_lea.vmem [#allocation2], %s157
          %s159 = sadd.s32 %s25, %s26
          %p160 = scmp.lt.s32.totalorder %s159, 0
          %s161 = scalar_select %p160, %s159, 0
          %s163 = ssub.s32 128, 128
          %164 = vsyncadd %s155, %s163
          %s165 = sadd.s32 %s161, %s24
          %s166 = smul.addr %s165, 128
          %s167 = scalar_lea.hbm %s0, %s166
          %s169 = sshll.u32 %s158, 4
          %s170 = int_to_ptr.vmem [resolvable:$true] %s169
          %172 = dma.hbm_to_vmem [thread:$0]  %s167, 128, %s170, %s155
        $region20: #{tpu_custom_call.1} parent=15 // pred_fallthru
          _
        // Predicated region
        $region21: #{tpu_custom_call.1} parent=15 // pred_check
          %p173 = pneg %p98
        $region22: #{tpu_custom_call.1} parent=15 // pred_check_branch
          %175 = sbr.rel (%p173) target = $region24
        $region23: #{tpu_custom_call.1} parent=15 // pred_region
          %s176 = sand.u32 %s88, 1
          %s177 = scalar_lea.sflag [#allocation6], %s176
          %s178 = sand.u32 %s88, 1
          %s179 = smul.addr %s178, 8
          %s180 = scalar_lea.vmem [#allocation5], %s179
          %s181 = sadd.s32 %s25, %s26
          %p182 = scmp.lt.s32.totalorder %s181, 0
          %s183 = scalar_select %p182, %s181, 0
          %s185 = ssub.s32 128, 128
          %186 = vsyncadd %s177, %s185
          %s187 = sadd.s32 %s183, %s24
          %s188 = smul.addr %s187, 128
          %s189 = scalar_lea.hbm %s1, %s188
          %s191 = sshll.u32 %s180, 4
          %s192 = int_to_ptr.vmem [resolvable:$true] %s191
          %194 = dma.hbm_to_vmem [thread:$0]  %s189, 128, %s192, %s177
        $region24: #{tpu_custom_call.1} parent=15 // pred_fallthru
          _
      $region16: #{tpu_custom_call.1} parent=5 // pred_fallthru
        _
      %p195 = scmp.le.s32.totalorder 1, %s17
      %p196 = scmp.lt.s32.totalorder %s17, 3
      %p197 = pnand %p195, %p196
      %p198 = pneg %p197
      // Predicated region
      $region25: #{tpu_custom_call.1} parent=5 // pred_check
        _
      $region26: #{tpu_custom_call.1} parent=5 // pred_check_branch
        %200 = sbr.rel (%p197) target = $region28
      $region27: #{tpu_custom_call.1} parent=5 // pred_region
        %s201 = ssub.s32 %s17, 1
        %s202 = sand.u32 %s57, 1
        %s203 = scalar_lea.sflag [#allocation3], %s202
        %s204 = sand.u32 %s57, 1
        %s205 = smul.addr %s204, 8
        %s206 = scalar_lea.vmem [#allocation2], %s205
        // Predicated region
        $region29: #{tpu_custom_call.1} parent=27 // pred_check
          %p207 = pneg %p70
        $region30: #{tpu_custom_call.1} parent=27 // pred_check_branch
          %209 = sbr.rel (%p207) target = $region32
        $region31: #{tpu_custom_call.1} parent=27 // pred_region
          %210 = dma.done %s203, 128
        $region32: #{tpu_custom_call.1} parent=27 // pred_fallthru
          _
        %s211 = sand.u32 %s91, 1
        %s212 = scalar_lea.sflag [#allocation6], %s211
        %s213 = sand.u32 %s91, 1
        %s214 = smul.addr %s213, 8
        %s215 = scalar_lea.vmem [#allocation5], %s214
        // Predicated region
        $region33: #{tpu_custom_call.1} parent=27 // pred_check
          %p216 = pneg %p104
        $region34: #{tpu_custom_call.1} parent=27 // pred_check_branch
          %218 = sbr.rel (%p216) target = $region36
        $region35: #{tpu_custom_call.1} parent=27 // pred_region
          %219 = dma.done %s212, 128
        $region36: #{tpu_custom_call.1} parent=27 // pred_fallthru
          _
        %s220 = sand.u32 %s57, 1
        %s221 = scalar_lea.sflag [#allocation3], %s220
        %s222 = sand.u32 %s57, 1
        %s223 = smul.addr %s222, 8
        %s224 = scalar_lea.vmem [#allocation2], %s223
        %p225 = pneg %p70
        %p226 = pneg %p67
        %s227 = sand.u32 %s91, 1
        %s228 = scalar_lea.sflag [#allocation6], %s227
        %s229 = sand.u32 %s91, 1
        %s230 = smul.addr %s229, 8
        %s231 = scalar_lea.vmem [#allocation5], %s230
        %p232 = pneg %p104
        %p233 = pneg %p101
        %p234 = pneg %p132
        %p235 = pneg %p129
        %s236 = sand.u32 %s119, 1
        %s237 = scalar_lea.sflag [#allocation4], %s236
        %s238 = sand.u32 %s119, 1
        %s239 = smul.addr %s238, 8
        %s240 = scalar_lea.vmem [#allocation7], %s239
        %s241 = sadd.s32 %s28, %s29
        %p242 = scmp.lt.s32.totalorder %s241, 0
        %s243 = scalar_select %p242, %s241, 0
        %s244 = sadd.s32 %s28, %s29
        %p245 = scmp.lt.s32.totalorder %s244, 0
        %s246 = scalar_select %p245, %s244, 0
        %p247 = scmp.eq.s32.totalorder %s29, 0
        // Predicated region
        $region37: #{tpu_custom_call.1} parent=27 // pred_check
          %p248 = pneg %p247
        $region38: #{tpu_custom_call.1} parent=27 // pred_check_branch
          %250 = sbr.rel (%p248) target = $region40
        $region39: #{tpu_custom_call.1} parent=27 // pred_region
          %251 = vst [vmem:[%s240] sm:$0xff] 0.0
        $region40: #{tpu_custom_call.1} parent=27 // pred_fallthru
          _
        %v252 = vld [vmem:[%s206] sm:$0xff]
        %v253 = vld [vmem:[%s215] sm:$0xff]
        %v254 = vsub.f32 %v252, %v253
        %v255 = vmul.f32 %v254, %v254
        %v256 = vadd.f32 %v255, 0.0
        %v257 = vld [vmem:[%s240] sm:$0xff]
        %v258 = vadd.f32 %v257, %v256
        %259 = vst [vmem:[%s240] sm:$0xff] %v258
        %s260 = sand.u32 %s119, 1
        %s261 = scalar_lea.sflag [#allocation4], %s260
        %s262 = sand.u32 %s119, 1
        %s263 = smul.addr %s262, 8
        %s264 = scalar_lea.vmem [#allocation7], %s263
        // Predicated region
        $region41: #{tpu_custom_call.1} parent=27 // pred_check
          %p265 = pneg %p129
        $region42: #{tpu_custom_call.1} parent=27 // pred_check_branch
          %267 = sbr.rel (%p265) target = $region44
        $region43: #{tpu_custom_call.1} parent=27 // pred_region
          %s269 = ssub.s32 128, 128
          %270 = vsyncadd %s261, %s269
          %s271 = sadd.s32 %s28, %s27
          %s272 = smul.addr %s271, 128
          %s273 = scalar_lea.hbm %s2, %s272
          %s275 = sshll.u32 %s264, 4
          %s276 = int_to_ptr.vmem [resolvable:$true] %s275
          %278 = dma.vmem_to_hbm [thread:$0]  %s276, 128, %s273, %s261
        $region44: #{tpu_custom_call.1} parent=27 // pred_fallthru
          _
      $region28: #{tpu_custom_call.1} parent=5 // pred_fallthru
        _
      %p279 = scmp.le.s32.totalorder 2, %s17
      // Predicated region
      $region45: #{tpu_custom_call.1} parent=5 // pred_check
        %p280 = pneg %p279
      $region46: #{tpu_custom_call.1} parent=5 // pred_check_branch
        %282 = sbr.rel (%p280) target = $region48
      $region47: #{tpu_custom_call.1} parent=5 // pred_region
        %s283 = ssub.s32 %s17, 2
        // Predicated region
        $region49: #{tpu_custom_call.1} parent=47 // pred_check
          %p284 = pneg %p135
        $region50: #{tpu_custom_call.1} parent=47 // pred_check_branch
          %286 = sbr.rel (%p284) target = $region52
        $region51: #{tpu_custom_call.1} parent=47 // pred_region
          %s287 = sand.u32 %s120, 1
          %s288 = scalar_lea.sflag [#allocation4], %s287
          %s289 = sand.u32 %s120, 1
          %s290 = smul.addr %s289, 8
          %s291 = scalar_lea.vmem [#allocation7], %s290
          %292 = dma.done %s288, 128
        $region52: #{tpu_custom_call.1} parent=47 // pred_fallthru
          _
      $region48: #{tpu_custom_call.1} parent=5 // pred_fallthru
        _
    $region6: #{tpu_custom_call.1} parent=1 // loop_footer
      %s21 = sadd.s32 1, %s17
    $region7: #{tpu_custom_call.1} parent=1 // loop_footer_branch
      %16 = sbr.rel target = $region3
    $region8: #{tpu_custom_call.1} parent=1 // loop_exit
      _
    %293 = vsyncpa [#allocation3], 1
    %s294 = scalar_lea.sflag [#allocation3], 1
    %295 = vsyncpa %s294, 1
    %296 = vsyncpa [#allocation6], 1
    %s297 = scalar_lea.sflag [#allocation6], 1
    %298 = vsyncpa %s297, 1
    %299 = vsyncpa [#allocation4], 1
    %s300 = scalar_lea.sflag [#allocation4], 1
    %301 = vsyncpa %s300, 1

</llo_original>
